<compile_context>
chip_gen: v7x
topology: tpu7x:2x2x1
jax: 0.10.0
libtpu: 0.0.40
codegen_flags: <defaults>
</compile_context>

<pallas_src>
import functools

import jax
import jax.numpy as jnp
import numpy as np
from jax import lax
from jax.experimental import pallas as pl
from jax.experimental.pallas import tpu as pltpu


def _round_up(x, m):
    return ((x + m - 1) // m) * m


def _pair(v):
    return (v, v) if isinstance(v, int) else tuple(v)


def _tpu_vmem_capacity_bytes():
    """Best-effort per-TensorCore VMEM query; conservative (v7x) fallback."""
    try:
        info = pltpu.get_tpu_info()
        cap = int(getattr(info, "vmem_capacity_bytes", 0))
        if cap > 0:
            return cap
    except Exception:
        pass
    return 64 << 20  # assume the smallest (v7x-class) VMEM if the query fails


# ----------------------------------------------------------------------------
# Pallas kernel: one row-tile of the im2col matmul, fused bias + ReLU.
#   lhs_ref : (m_tile, K_p)    compute_dtype (bf16)  -- im2col rows
#   w_ref   : (K_p,   Cout_p)  compute_dtype (bf16)  -- BN-folded weights
#   b_ref   : (1,     Cout_p)  f32                   -- BN-folded bias
#   o_ref   : (m_tile, Cout_p) out_dtype
# ----------------------------------------------------------------------------
def _matmul_bias_relu_kernel(lhs_ref, w_ref, b_ref, o_ref):
    acc = jnp.dot(lhs_ref[...], w_ref[...], preferred_element_type=jnp.float32)
    o_ref[...] = jnp.maximum(acc + b_ref[...], 0.0).astype(o_ref.dtype)


# ----------------------------------------------------------------------------
# Wrapper: BN folding, dense-K im2col, row tiling, pallas_call.
# ----------------------------------------------------------------------------
def basic_conv2d_pallas(x, weight, gamma, beta, mean, var, *,
                        stride, padding, eps=1e-3,
                        compute_dtype=jnp.bfloat16, out_dtype=None,
                        input_format="NCHW", output_format="NCHW"):
    sh, sw = _pair(stride)
    ph, pw = _pair(padding)
    Cout, Cin, kh, kw = weight.shape

    if input_format == "NCHW":
        x = jnp.transpose(x, (0, 2, 3, 1))          # -> NHWC
    elif input_format != "NHWC":
        raise ValueError(f"unsupported input_format {input_format}")
    B, H, W, cin_in = x.shape
    if cin_in != Cin:
        raise ValueError("input channels do not match weight")

    OH = (H + 2 * ph - kh) // sh + 1
    OW = (W + 2 * pw - kw) // sw + 1
    out_dtype = x.dtype if out_dtype is None else out_dtype

    K = kh * kw * Cin                                 # dense contraction length
    K_p = _round_up(K, 128)                           # pad only the TOTAL K
    Cout_p = _round_up(Cout, 128)
    M = B * OH * OW

    # ---- fold eval-mode BatchNorm into the conv weight / bias ----
    # (could be precomputed once per layer and reused across calls)
    scale = gamma / jnp.sqrt(var + eps)
    w_fold = weight * scale[:, None, None, None]      # (Cout, Cin, kh, kw)
    bias = beta - mean * scale
    # tap-major (kh, kw) then Cin -- must match the patch packing below.
    w_k = jnp.transpose(w_fold, (2, 3, 1, 0)).reshape(K, Cout)
    w_k = jnp.pad(w_k, ((0, K_p - K), (0, Cout_p - Cout))).astype(compute_dtype)
    b_k = jnp.pad(bias, (0, Cout_p - Cout)).reshape(1, Cout_p).astype(jnp.float32)

    # ---- wrapper-side im2col: dense K packing, strides via strided slices ----
    xp = jnp.pad(x, ((0, 0), (ph, ph), (pw, pw), (0, 0)))
    taps = []
    for di in range(kh):
        for dj in range(kw):
            taps.append(lax.slice(
                xp,
                (0, di, dj, 0),
                (B, di + (OH - 1) * sh + 1, dj + (OW - 1) * sw + 1, Cin),
                (1, sh, sw, 1)))
    patches = taps[0] if len(taps) == 1 else jnp.concatenate(taps, axis=-1)
    patches = jnp.pad(patches, ((0, 0), (0, 0), (0, 0), (0, K_p - K)))
    lhs = patches.reshape(M, K_p).astype(compute_dtype)

    # ---- generation-aware tile / VMEM budget selection ----
    vmem_cap = _tpu_vmem_capacity_bytes()
    if vmem_cap <= (64 << 20):            # v7x-class TensorCore: 64 MiB VMEM
        target_rows, step_budget, vmem_limit = 1024, 14 << 20, 56 << 20
    else:                                 # v5e / v6e: 128 MiB VMEM
        target_rows, step_budget, vmem_limit = 2048, 40 << 20, 96 << 20

    out_isz = jnp.dtype(out_dtype).itemsize
    cmp_isz = jnp.dtype(compute_dtype).itemsize

    def step_bytes(mt):
        lhs_b = 2 * mt * K_p * cmp_isz            # double-buffered LHS tile
        out_b = 2 * mt * Cout_p * out_isz         # double-buffered out tile
        acc_b = 2 * mt * Cout_p * 4               # f32 dot result + eltwise temp
        w_b = 2 * K_p * Cout_p * cmp_isz          # weights (constant index map,
        b_b = 2 * Cout_p * 4                      #  still double-buffered)
        return lhs_b + out_b + acc_b + w_b + b_b

    m_tile = min(_round_up(M, 16), _round_up(target_rows, 16))
    while m_tile > 16 and step_bytes(m_tile) > step_budget:
        m_tile = max(16, _round_up(m_tile // 2, 16))
    # Prefer >= 2 grid steps: uses both TensorCores on v7x and gives the
    # pipeline something to overlap; an extra step costs only ~0.35 us.
    if _round_up(M, m_tile) // m_tile < 2 and m_tile >= 32:
        m_tile = _round_up((m_tile + 1) // 2, 16)

    M_pad = _round_up(M, m_tile)
    n_tiles = M_pad // m_tile
    if M_pad != M:
        lhs = jnp.pad(lhs, ((0, M_pad - M), (0, 0)))

    cost = pl.CostEstimate(
        flops=2 * M_pad * K_p * Cout_p,
        transcendentals=0,
        bytes_accessed=int(M_pad * K_p * cmp_isz + K_p * Cout_p * cmp_isz
                           + M_pad * Cout_p * out_isz + Cout_p * 4),
    )

    # NOTE: the weight/bias index maps are constant so Pallas only fetches them
    # once; pipeline_mode=pl.Buffered(1) would also halve their VMEM footprint,
    # but the default is kept for portability (step_bytes already accounts for
    # the two buffers).
    out_flat = pl.pallas_call(
        _matmul_bias_relu_kernel,
        out_shape=jax.ShapeDtypeStruct((M_pad, Cout_p), out_dtype),
        grid_spec=pltpu.PrefetchScalarGridSpec(
            num_scalar_prefetch=0,
            grid=(n_tiles,),
            in_specs=[
                pl.BlockSpec((m_tile, K_p), lambda i: (i, 0)),
                pl.BlockSpec((K_p, Cout_p), lambda i: (0, 0)),
                pl.BlockSpec((1, Cout_p), lambda i: (0, 0)),
            ],
            out_specs=pl.BlockSpec((m_tile, Cout_p), lambda i: (i, 0)),
        ),
        compiler_params=pltpu.CompilerParams(
            dimension_semantics=("parallel",),      # row tiles are independent
            vmem_limit_bytes=int(vmem_limit),
        ),
        cost_estimate=cost,
    )(lhs, w_k, b_k)

    out = out_flat[:M, :Cout].reshape(B, OH, OW, Cout)
    if output_format == "NCHW":
        out = jnp.transpose(out, (0, 3, 1, 2))
    elif output_format != "NHWC":
        raise ValueError(f"unsupported output_format {output_format}")
    return out


# ----------------------------------------------------------------------------
# Pure-JAX reference (NCHW, eval-mode BN) for checking the kernel.
# ----------------------------------------------------------------------------
def basic_conv2d_ref(x, weight, gamma, beta, mean, var, *,
                     stride, padding, eps=1e-3):
    sh, sw = _pair(stride)
    ph, pw = _pair(padding)
    y = lax.conv_general_dilated(
        x, weight, (sh, sw), [(ph, ph), (pw, pw)],
        dimension_numbers=('NCHW', 'OIHW', 'NCHW'))
    s = gamma / jnp.sqrt(var + eps)
    y = y * s[None, :, None, None] + (beta - mean * s)[None, :, None, None]
    return jnp.maximum(y, 0.0)


# ----------------------------------------------------------------------------
if __name__ == "__main__":
    key = jax.random.PRNGKey(0)

    # (B, Cin, H, W, Cout, kernel_size, stride, padding) — small, module-typical.
    configs = [
        (2, 4, 16, 16, 32, (3, 3), (1, 1), (1, 1)),   # 3x3, stride 1
        (2, 8, 16, 16, 16, (3, 3), (2, 2), (1, 1)),   # 3x3, stride 2
        (2, 8, 16, 16, 32, (1, 7), (1, 1), (0, 3)),   # asymmetric 1x7
    ]

    for (B, Cin, H, W, Cout, ks, st, pd) in configs:
        key, kx, kw_, kg, kb, km, kv = jax.random.split(key, 7)
        x = jax.random.normal(kx, (B, Cin, H, W), jnp.float32)
        w = jax.random.normal(kw_, (Cout, Cin) + ks, jnp.float32) * 0.05
        gamma = jax.random.uniform(kg, (Cout,), jnp.float32, 0.5, 1.5)
        beta = jax.random.normal(kb, (Cout,), jnp.float32) * 0.1
        mean = jax.random.normal(km, (Cout,), jnp.float32) * 0.1
        var = jax.random.uniform(kv, (Cout,), jnp.float32, 0.5, 1.5)

        fn = jax.jit(functools.partial(basic_conv2d_pallas,
                                       stride=st, padding=pd))
        out = fn(x, w, gamma, beta, mean, var)
        jax.block_until_ready(out)

        ref = basic_conv2d_ref(x, w, gamma, beta, mean, var,
                               stride=st, padding=pd)
        np.testing.assert_allclose(np.asarray(out), np.asarray(ref),
                                   rtol=3e-2, atol=3e-2)

    print("KERNEL_OK")
</pallas_src>

<mosaic_0001>
module attributes {stable_mosaic.version = 11 : i64} {
  func.func @_matmul_bias_relu_kernel(%arg0: i32, %arg1: memref<256x128xbf16, #tpu.memory_space<vmem>>, %arg2: memref<128x128xbf16, #tpu.memory_space<vmem>>, %arg3: memref<1x128xf32, #tpu.memory_space<vmem>>, %arg4: memref<256x128xf32, #tpu.memory_space<vmem>>) attributes {dimension_semantics = [#tpu.dimension_semantics<parallel>], iteration_bounds = array<i64: 2>, scalar_prefetch = 0 : i64, scratch_operands = 0 : i64, tpu.core_type = #tpu.core_type<tc>, window_params = [{transform_indices = @transform_0, window_bounds = array<i64: 256, 128>}, {pipeline_mode = #tpu.pipeline_mode<synchronous>, transform_indices = @transform_1, window_bounds = array<i64: 128, 128>}, {pipeline_mode = #tpu.pipeline_mode<synchronous>, transform_indices = @transform_2, window_bounds = array<i64: 1, 128>}, {transform_indices = @transform_3, window_bounds = array<i64: 256, 128>}]} {
    %c0 = arith.constant 0 : index
    %c0_0 = arith.constant 0 : index
    %0 = vector.load %arg1[%c0, %c0_0] : memref<256x128xbf16, #tpu.memory_space<vmem>>, vector<256x128xbf16>
    %c0_1 = arith.constant 0 : index
    %c0_2 = arith.constant 0 : index
    %1 = vector.load %arg2[%c0_1, %c0_2] : memref<128x128xbf16, #tpu.memory_space<vmem>>, vector<128x128xbf16>
    %cst = arith.constant dense<0.000000e+00> : vector<256x128xf32>
    %2 = tpu.matmul %0, %1, %cst {dimension_numbers = #tpu.dot_dimension_numbers<[1], [0], [0], [1], [0, 0, 1, 1], [], []>} : vector<256x128xbf16>, vector<128x128xbf16>, vector<256x128xf32> -> vector<256x128xf32>
    %c0_3 = arith.constant 0 : index
    %c0_4 = arith.constant 0 : index
    %3 = vector.load %arg3[%c0_3, %c0_4] : memref<1x128xf32, #tpu.memory_space<vmem>>, vector<1x128xf32>
    %4 = vector.broadcast %3 : vector<1x128xf32> to vector<256x128xf32>
    %5 = arith.addf %2, %4 : vector<256x128xf32>
    %cst_5 = arith.constant 0.000000e+00 : f32
    %6 = vector.broadcast %cst_5 : f32 to vector<256x128xf32>
    %7 = arith.maximumf %5, %6 : vector<256x128xf32>
    %c0_6 = arith.constant 0 : index
    %c0_7 = arith.constant 0 : index
    %8 = vector.load %arg4[%c0_6, %c0_7] : memref<256x128xf32, #tpu.memory_space<vmem>>, vector<256x128xf32>
    tpu.vector_store %arg4[%c0_6, %c0_7], %7 {strides = array<i32>} : memref<256x128xf32, #tpu.memory_space<vmem>>, vector<256x128xf32>,
    return
  }
  func.func @transform_0(%arg0: i32) -> (i32, i32) {
    %c0_i32 = arith.constant 0 : i32
    %c0_i32_0 = arith.constant 0 : i32
    return %arg0, %c0_i32 : i32, i32
  }
  func.func @transform_1(%arg0: i32) -> (i32, i32) {
    %c0_i32 = arith.constant 0 : i32
    %c0_i32_0 = arith.constant 0 : i32
    %c0_i32_1 = arith.constant 0 : i32
    return %c0_i32, %c0_i32_0 : i32, i32
  }
  func.func @transform_2(%arg0: i32) -> (i32, i32) {
    %c0_i32 = arith.constant 0 : i32
    %c0_i32_0 = arith.constant 0 : i32
    %c0_i32_1 = arith.constant 0 : i32
    return %c0_i32, %c0_i32_0 : i32, i32
  }
  func.func @transform_3(%arg0: i32) -> (i32, i32) {
    %c0_i32 = arith.constant 0 : i32
    %c0_i32_0 = arith.constant 0 : i32
    return %arg0, %c0_i32 : i32, i32
  }
}

</mosaic_0001>

<llo_original>
// kernel: basic_conv2d_pallas.1
$region0: #{basic_conv2d_pallas.1}
  #allocation0 [shape = 'u32[]', space=smem, size = 0x4, offset = 0x4, fixed_abs, tag = 'smem constant byte address 0x4 - core index']
  #allocation1 [shape = 'u32[144,128]{1,0:T(1,128)}', space=vmem, size = 0x12000, scoped, tag = 'internal scratch']
  %s0 = inlined_call_operand.vmem [shape: bf16[512,128], index: 0, kind: input, shape index: {}]
  %s1 = inlined_call_operand.vmem [shape: bf16[128,128], index: 1, kind: input, shape index: {}]
  %s2 = inlined_call_operand.vmem [shape: f32[1,128], index: 2, kind: input, shape index: {}]
  %s3 = inlined_call_operand.hbm [shape: f32[512,128], index: 3, kind: output, shape index: {}]
  %s4 = sld [smem:[#allocation0]]
  $region45: #{basic_conv2d_pallas.1} parent=0
    _
  %s6 = ssub.s32 1, %s4
  %s7 = scalar_select 0, %s6, %s4
  $region1: #{basic_conv2d_pallas.1} parent=0
    #allocation2 [shape = 'u8[262144]{0}', space=vmem, size = 0x40000, scoped, tag = 'output window, operand 0']
    #allocation3 [shape = 's32[2]{0}', space=sflag, size = 0x8, scoped, tag = 'scoped memory for basic_conv2d_pallas.1']
    %8 = vsyncpa [#allocation3], 0
    %s9 = scalar_lea.sflag [#allocation3], 1
    %10 = vsyncpa %s9, 0
    loop: start=0, step=1, limit=4
    $region2: #{basic_conv2d_pallas.1} parent=1 // loop_pre_header
      _
    $region3: #{basic_conv2d_pallas.1} parent=1 // loop_header
      %s12 = sphi 0, %s16
      %p13 = scmp.ge.s32.totalorder %s12, 4
      %s22 = sphi 0, %s24
      %s25 = sphi 0, %s22
      %s26 = sphi 0, %s25
      %s42 = sphi 0, %s26
      %s46 = sphi 0, %s46
      %s48 = sphi 0, %s46
      %s49 = sphi 0, %s48
      %s63 = sphi 0, %s49
      %s67 = sphi 0, %s67
      %s69 = sphi 0, %s67
      %s70 = sphi 0, %s69
      %s84 = sphi 0, %s70
      %s90 = sphi 0, %s92
      %s93 = sphi 0, %s90
      %s94 = sphi 0, %s93
      %s110 = sphi 0, %s94
    $region4: #{basic_conv2d_pallas.1} parent=1 // loop_header_branch
      %15 = sbr.rel (%p13) target = $region8
    $region5: #{basic_conv2d_pallas.1} parent=1 // loop_body
      %s17 = ssub.s32 %s12, 1
      %s18 = ssub.s32 %s12, 2
      %s19 = sadd.s32 %s12, 1
      %s20 = ssub.s32 %s12, %s19
      %p21 = scmp.eq.s32.totalorder %s20, 0
      %s23 = sadd.s32 %s22, 1
      %s24 = scalar_select %p21, %s22, %s23
      %p27 = pneg %p21
      %p28 = scmp.eq.s32.totalorder %s12, 1
      %p29 = por %p27, %p28
      %p30 = scmp.ne.s32.totalorder %s22, %s25
      %p31 = scmp.eq.s32.totalorder %s12, 0
      %p32 = por %p30, %p31
      %p33 = scmp.ne.s32.totalorder %s22, %s25
      %p34 = scmp.eq.s32.totalorder %s17, 1
      %p35 = por %p33, %p34
      %p36 = scmp.ne.s32.totalorder %s25, %s26
      %p37 = scmp.eq.s32.totalorder %s17, 0
      %p38 = por %p36, %p37
      %p39 = scmp.ne.s32.totalorder %s25, %s26
      %p40 = scmp.eq.s32.totalorder %s18, 1
      %p41 = por %p39, %p40
      %p43 = scmp.ne.s32.totalorder %s26, %s42
      %p44 = scmp.eq.s32.totalorder %s18, 0
      %p45 = por %p43, %p44
      %s47 = sadd.s32 %s46, 1
      %p50 = scmp.eq.s32.totalorder %s12, 1
      %p51 = scmp.ne.s32.totalorder %s46, %s48
      %p52 = scmp.eq.s32.totalorder %s12, 0
      %p53 = por %p51, %p52
      %p54 = scmp.ne.s32.totalorder %s46, %s48
      %p55 = scmp.eq.s32.totalorder %s17, 1
      %p56 = por %p54, %p55
      %p57 = scmp.ne.s32.totalorder %s48, %s49
      %p58 = scmp.eq.s32.totalorder %s17, 0
      %p59 = por %p57, %p58
      %p60 = scmp.ne.s32.totalorder %s48, %s49
      %p61 = scmp.eq.s32.totalorder %s18, 1
      %p62 = por %p60, %p61
      %p64 = scmp.ne.s32.totalorder %s49, %s63
      %p65 = scmp.eq.s32.totalorder %s18, 0
      %p66 = por %p64, %p65
      %s68 = sadd.s32 %s67, 1
      %p71 = scmp.eq.s32.totalorder %s12, 1
      %p72 = scmp.ne.s32.totalorder %s67, %s69
      %p73 = scmp.eq.s32.totalorder %s12, 0
      %p74 = por %p72, %p73
      %p75 = scmp.ne.s32.totalorder %s67, %s69
      %p76 = scmp.eq.s32.totalorder %s17, 1
      %p77 = por %p75, %p76
      %p78 = scmp.ne.s32.totalorder %s69, %s70
      %p79 = scmp.eq.s32.totalorder %s17, 0
      %p80 = por %p78, %p79
      %p81 = scmp.ne.s32.totalorder %s69, %s70
      %p82 = scmp.eq.s32.totalorder %s18, 1
      %p83 = por %p81, %p82
      %p85 = scmp.ne.s32.totalorder %s70, %s84
      %p86 = scmp.eq.s32.totalorder %s18, 0
      %p87 = por %p85, %p86
      %s88 = ssub.s32 %s12, %s19
      %p89 = scmp.eq.s32.totalorder %s88, 0
      %s91 = sadd.s32 %s90, 1
      %s92 = scalar_select %p89, %s90, %s91
      %p95 = pneg %p89
      %p96 = scmp.eq.s32.totalorder %s12, 1
      %p97 = por %p95, %p96
      %p98 = scmp.ne.s32.totalorder %s90, %s93
      %p99 = scmp.eq.s32.totalorder %s12, 0
      %p100 = por %p98, %p99
      %p101 = scmp.ne.s32.totalorder %s90, %s93
      %p102 = scmp.eq.s32.totalorder %s17, 1
      %p103 = por %p101, %p102
      %p104 = scmp.ne.s32.totalorder %s93, %s94
      %p105 = scmp.eq.s32.totalorder %s17, 0
      %p106 = por %p104, %p105
      %p107 = scmp.ne.s32.totalorder %s93, %s94
      %p108 = scmp.eq.s32.totalorder %s18, 1
      %p109 = por %p107, %p108
      %p111 = scmp.ne.s32.totalorder %s94, %s110
      %p112 = scmp.eq.s32.totalorder %s18, 0
      %p113 = por %p111, %p112
      %p114 = scmp.le.s32.totalorder 1, %s12
      %p115 = scmp.lt.s32.totalorder %s12, 3
      %p116 = pnand %p114, %p115
      %p117 = pneg %p116
      // Predicated region
      $region9: #{basic_conv2d_pallas.1} parent=5 // pred_check
        _
      $region10: #{basic_conv2d_pallas.1} parent=5 // pred_check_branch
        %119 = sbr.rel (%p116) target = $region12
      $region11: #{basic_conv2d_pallas.1} parent=5 // pred_region
        %s120 = ssub.s32 %s12, 1
        // Predicated region
        $region13: #{basic_conv2d_pallas.1} parent=11 // pred_check
          %p121 = pneg %p59
        $region14: #{basic_conv2d_pallas.1} parent=11 // pred_check_branch
          %123 = sbr.rel (%p121) target = $region16
        $region15: #{basic_conv2d_pallas.1} parent=11 // pred_region
          _
        $region16: #{basic_conv2d_pallas.1} parent=11 // pred_fallthru
          _
        // Predicated region
        $region17: #{basic_conv2d_pallas.1} parent=11 // pred_check
          %p124 = pneg %p80
        $region18: #{basic_conv2d_pallas.1} parent=11 // pred_check_branch
          %126 = sbr.rel (%p124) target = $region20
        $region19: #{basic_conv2d_pallas.1} parent=11 // pred_region
          _
        $region20: #{basic_conv2d_pallas.1} parent=11 // pred_fallthru
          _
      $region12: #{basic_conv2d_pallas.1} parent=5 // pred_fallthru
        _
      %p127 = scmp.lt.s32.totalorder %s12, 2
      // Predicated region
      $region21: #{basic_conv2d_pallas.1} parent=5 // pred_check
        %p128 = pneg %p127
      $region22: #{basic_conv2d_pallas.1} parent=5 // pred_check_branch
        %130 = sbr.rel (%p128) target = $region24
      $region23: #{basic_conv2d_pallas.1} parent=5 // pred_region
        // Predicated region
        $region25: #{basic_conv2d_pallas.1} parent=23 // pred_check
          %p131 = pneg %p32
        $region26: #{basic_conv2d_pallas.1} parent=23 // pred_check_branch
          %133 = sbr.rel (%p131) target = $region28
        $region27: #{basic_conv2d_pallas.1} parent=23 // pred_region
          %s134 = smul.u32 32, %s12
          %p135 = scmp.lt.s32.totalorder %s134, 63
          %s136 = scalar_select %p135, %s134, 63
          %s137 = smul.addr %s136, 4
          %s138 = scalar_lea.vmem %s0, %s137
          %s139 = smul.u32 32, %s12
        $region28: #{basic_conv2d_pallas.1} parent=23 // pred_fallthru
          _
      $region24: #{basic_conv2d_pallas.1} parent=5 // pred_fallthru
        _
      %p140 = scmp.le.s32.totalorder 1, %s12
      %p141 = scmp.lt.s32.totalorder %s12, 3
      %p142 = pnand %p140, %p141
      %p143 = pneg %p142
      // Predicated region
      $region29: #{basic_conv2d_pallas.1} parent=5 // pred_check
        _
      $region30: #{basic_conv2d_pallas.1} parent=5 // pred_check_branch
        %145 = sbr.rel (%p142) target = $region32
      $region31: #{basic_conv2d_pallas.1} parent=5 // pred_region
        %s146 = ssub.s32 %s12, 1
        %s147 = smul.u32 32, %s17
        %p148 = scmp.lt.s32.totalorder %s147, 63
        %s149 = scalar_select %p148, %s147, 63
        %s150 = smul.addr %s149, 4
        %s151 = scalar_lea.vmem %s0, %s150
        %p152 = pneg %p38
        %p153 = pneg %p35
        %p154 = pneg %p59
        %p155 = pneg %p56
        %p156 = pneg %p80
        %p157 = pneg %p77
        %p158 = pneg %p106
        %p159 = pneg %p103
        %s160 = sand.u32 %s93, 1
        %s161 = scalar_lea.sflag [#allocation3], %s160
        %s162 = sand.u32 %s93, 1
        %s163 = smul.addr %s162, 256
        %s164 = scalar_lea.vmem [#allocation2], %s163
        %s165 = smul.u32 32, %s17
        %p166 = scmp.lt.s32.totalorder %s165, 63
        %s167 = scalar_select %p166, %s165, 63
        %s168 = smul.addr %s167, 4
        %s169 = scalar_lea.vmem %s0, %s168
        %s170 = smul.u32 32, %s17
        %s171 = smul.u32 32, %s17
        %v173 = vld [vmem:[%s169] sm:$0xf]
        %v174 = vld [vmem:[%s169 + $0x4] sm:$0xf]
        %v175 = vld [vmem:[%s169 + $0x8] sm:$0xf]
        %v176 = vld [vmem:[%s169 + $0xc] sm:$0xf]
        %v177 = vld [vmem:[%s169 + $0x10] sm:$0xf]
        %v178 = vld [vmem:[%s169 + $0x14] sm:$0xf]
        %v179 = vld [vmem:[%s169 + $0x18] sm:$0xf]
        %v180 = vld [vmem:[%s169 + $0x1c] sm:$0xf]
        %v181 = vld [vmem:[%s169 + $0x20] sm:$0xf]
        %v182 = vld [vmem:[%s169 + $0x24] sm:$0xf]
        %v183 = vld [vmem:[%s169 + $0x28] sm:$0xf]
        %v184 = vld [vmem:[%s169 + $0x2c] sm:$0xf]
        %v185 = vld [vmem:[%s169 + $0x30] sm:$0xf]
        %v186 = vld [vmem:[%s169 + $0x34] sm:$0xf]
        %v187 = vld [vmem:[%s169 + $0x38] sm:$0xf]
        %v188 = vld [vmem:[%s169 + $0x3c] sm:$0xf]
        %v189 = vld [vmem:[%s169 + $0x40] sm:$0xf]
        %v190 = vld [vmem:[%s169 + $0x44] sm:$0xf]
        %v191 = vld [vmem:[%s169 + $0x48] sm:$0xf]
        %v192 = vld [vmem:[%s169 + $0x4c] sm:$0xf]
        %v193 = vld [vmem:[%s169 + $0x50] sm:$0xf]
        %v194 = vld [vmem:[%s169 + $0x54] sm:$0xf]
        %v195 = vld [vmem:[%s169 + $0x58] sm:$0xf]
        %v196 = vld [vmem:[%s169 + $0x5c] sm:$0xf]
        %v197 = vld [vmem:[%s169 + $0x60] sm:$0xf]
        %v198 = vld [vmem:[%s169 + $0x64] sm:$0xf]
        %v199 = vld [vmem:[%s169 + $0x68] sm:$0xf]
        %v200 = vld [vmem:[%s169 + $0x6c] sm:$0xf]
        %v201 = vld [vmem:[%s169 + $0x70] sm:$0xf]
        %v202 = vld [vmem:[%s169 + $0x74] sm:$0xf]
        %v203 = vld [vmem:[%s169 + $0x78] sm:$0xf]
        %v204 = vld [vmem:[%s169 + $0x7c] sm:$0xf]
        %v205 = vld [vmem:[%s1] sm:$0xf]
        %v206 = vld [vmem:[%s1 + $0x4] sm:$0xf]
        %v207 = vld [vmem:[%s1 + $0x8] sm:$0xf]
        %v208 = vld [vmem:[%s1 + $0xc] sm:$0xf]
        %v209 = vld [vmem:[%s1 + $0x10] sm:$0xf]
        %v210 = vld [vmem:[%s1 + $0x14] sm:$0xf]
        %v211 = vld [vmem:[%s1 + $0x18] sm:$0xf]
        %v212 = vld [vmem:[%s1 + $0x1c] sm:$0xf]
        %v213 = vld [vmem:[%s1 + $0x20] sm:$0xf]
        %v214 = vld [vmem:[%s1 + $0x24] sm:$0xf]
        %v215 = vld [vmem:[%s1 + $0x28] sm:$0xf]
        %v216 = vld [vmem:[%s1 + $0x2c] sm:$0xf]
        %v217 = vld [vmem:[%s1 + $0x30] sm:$0xf]
        %v218 = vld [vmem:[%s1 + $0x34] sm:$0xf]
        %v219 = vld [vmem:[%s1 + $0x38] sm:$0xf]
        %v220 = vld [vmem:[%s1 + $0x3c] sm:$0xf]
        %v221 = vld [vmem:[%s2] sm:$0x1]
        %v223 = vlaneseq
        %v224 = vshrl.u32 %v223, 7
        %v225 = vsub.s32 0, %v224
        %v226 = vrot.slane %v221, %v225
        %v260 = vunpack.c.l.b16 %v173
        %v261 = vunpack.c.l.b16 %v174
        %v262 = vunpack.c.l.b16 %v175
        %v263 = vunpack.c.l.b16 %v176
        %v264 = vunpack.c.l.b16 %v177
        %v265 = vunpack.c.l.b16 %v178
        %v266 = vunpack.c.l.b16 %v179
        %v267 = vunpack.c.l.b16 %v180
        %v268 = vunpack.c.l.b16 %v181
        %v269 = vunpack.c.l.b16 %v182
        %v270 = vunpack.c.l.b16 %v183
        %v271 = vunpack.c.l.b16 %v184
        %v272 = vunpack.c.l.b16 %v185
        %v273 = vunpack.c.l.b16 %v186
        %v274 = vunpack.c.l.b16 %v187
        %v275 = vunpack.c.l.b16 %v188
        %v276 = vunpack.c.l.b16 %v189
        %v277 = vunpack.c.l.b16 %v190
        %v278 = vunpack.c.l.b16 %v191
        %v279 = vunpack.c.l.b16 %v192
        %v280 = vunpack.c.l.b16 %v193
        %v281 = vunpack.c.l.b16 %v194
        %v282 = vunpack.c.l.b16 %v195
        %v283 = vunpack.c.l.b16 %v196
        %v284 = vunpack.c.l.b16 %v197
        %v285 = vunpack.c.l.b16 %v198
        %v286 = vunpack.c.l.b16 %v199
        %v287 = vunpack.c.l.b16 %v200
        %v288 = vunpack.c.l.b16 %v201
        %v289 = vunpack.c.l.b16 %v202
        %v290 = vunpack.c.l.b16 %v203
        %v291 = vunpack.c.l.b16 %v204
        %v292 = vpack.c.b16 %v261, %v260
        %v293 = vpack.c.b16 %v263, %v262
        %v294 = vpack.c.b16 %v265, %v264
        %v295 = vpack.c.b16 %v267, %v266
        %v296 = vpack.c.b16 %v269, %v268
        %v297 = vpack.c.b16 %v271, %v270
        %v298 = vpack.c.b16 %v273, %v272
        %v299 = vpack.c.b16 %v275, %v274
        %v300 = vpack.c.b16 %v277, %v276
        %v301 = vpack.c.b16 %v279, %v278
        %v302 = vpack.c.b16 %v281, %v280
        %v303 = vpack.c.b16 %v283, %v282
        %v304 = vpack.c.b16 %v285, %v284
        %v305 = vpack.c.b16 %v287, %v286
        %v306 = vpack.c.b16 %v289, %v288
        %v307 = vpack.c.b16 %v291, %v290
        %v340 = vunpack.c.l.b16 %v205
        %v341 = vunpack.c.l.b16 %v206
        %v342 = vunpack.c.l.b16 %v207
        %v343 = vunpack.c.l.b16 %v208
        %v344 = vunpack.c.l.b16 %v209
        %v345 = vunpack.c.l.b16 %v210
        %v346 = vunpack.c.l.b16 %v211
        %v347 = vunpack.c.l.b16 %v212
        %v348 = vunpack.c.l.b16 %v213
        %v349 = vunpack.c.l.b16 %v214
        %v350 = vunpack.c.l.b16 %v215
        %v351 = vunpack.c.l.b16 %v216
        %v352 = vunpack.c.l.b16 %v217
        %v353 = vunpack.c.l.b16 %v218
        %v354 = vunpack.c.l.b16 %v219
        %v355 = vunpack.c.l.b16 %v220
        %v356 = vpack.c.b16 %v341, %v340
        %v357 = vpack.c.b16 %v343, %v342
        %v358 = vpack.c.b16 %v345, %v344
        %v359 = vpack.c.b16 %v347, %v346
        %v360 = vpack.c.b16 %v349, %v348
        %v361 = vpack.c.b16 %v351, %v350
        %v362 = vpack.c.b16 %v353, %v352
        %v363 = vpack.c.b16 %v355, %v354
        %372 = vmatprep.subr.bf16.mxu0 0
        %373 = vmatpush1.bf16.msra.mxu0 %v356
        %374 = vmatprep.subr.bf16.mxu0 0
        %375 = vmatpush1.bf16.msra.mxu0 %v357
        %376 = vmatprep.subr.bf16.mxu0 0
        %377 = vmatpush1.bf16.msra.mxu0 %v358
        %378 = vmatprep.subr.bf16.mxu0 0
        %379 = vmatpush1.bf16.msra.mxu0 %v359
        %380 = vmatprep.subr.bf16.mxu0 0
        %381 = vmatpush1.bf16.msra.mxu0 %v360
        %382 = vmatprep.subr.bf16.mxu0 0
        %383 = vmatpush1.bf16.msra.mxu0 %v361
        %384 = vmatprep.subr.bf16.mxu0 0
        %385 = vmatpush1.bf16.msra.mxu0 %v362
        %386 = vmatprep.subr.bf16.mxu0 0
        %387 = vmatpush1.bf16.msra.mxu0 %v363
        %388 = vmatprep.subr.bf16.mxu0 0
        %389 = vmatpush1.bf16.msra.mxu0 0
        %390 = vmatprep.subr.bf16.mxu0 0
        %391 = vmatpush1.bf16.msra.mxu0 0
        %392 = vmatprep.subr.bf16.mxu0 0
        %393 = vmatpush1.bf16.msra.mxu0 0
        %394 = vmatprep.subr.bf16.mxu0 0
        %395 = vmatpush1.bf16.msra.mxu0 0
        %396 = vmatprep.subr.bf16.mxu0 0
        %397 = vmatpush1.bf16.msra.mxu0 0
        %398 = vmatprep.subr.bf16.mxu0 0
        %399 = vmatpush1.bf16.msra.mxu0 0
        %400 = vmatprep.subr.bf16.mxu0 0
        %401 = vmatpush1.bf16.msra.mxu0 0
        %402 = vmatprep.subr.bf16.mxu0 0
        %403 = vmatpush1.bf16.msra.mxu0 0
        %404 = vmatprep.mubr.bf16.mxu0 0
        %405 = vmatmul.mubr.bf16.gmra.mrb[0].mxu0 %v292
        %v406 = vpop.f32.mrb[0].mxu0
        %v407 = vadd.f32 %v226, %v406
        %v408 = vpop.f32.mrb[0].mxu0
        %v409 = vpop.f32.mrb[0].mxu0
        %v410 = vadd.f32 %v226, %v409
        %v411 = vpop.f32.mrb[0].mxu0
        %412 = vmatprep.mubr.bf16.mxu0 0
        %413 = vmatmul.mubr.bf16.gmra.mrb[0].mxu0 %v293
        %v414 = vpop.f32.mrb[0].mxu0
        %v415 = vadd.f32 %v226, %v414
        %v416 = vpop.f32.mrb[0].mxu0
        %v417 = vpop.f32.mrb[0].mxu0
        %v418 = vadd.f32 %v226, %v417
        %v419 = vpop.f32.mrb[0].mxu0
        %420 = vmatprep.mubr.bf16.mxu0 0
        %421 = vmatmul.mubr.bf16.gmra.mrb[0].mxu0 %v294
        %v422 = vpop.f32.mrb[0].mxu0
        %v423 = vadd.f32 %v226, %v422
        %v424 = vpop.f32.mrb[0].mxu0
        %v425 = vpop.f32.mrb[0].mxu0
        %v426 = vadd.f32 %v226, %v425
        %v427 = vpop.f32.mrb[0].mxu0
        %428 = vmatprep.mubr.bf16.mxu0 0
        %429 = vmatmul.mubr.bf16.gmra.mrb[0].mxu0 %v295
        %v430 = vpop.f32.mrb[0].mxu0
        %v431 = vadd.f32 %v226, %v430
        %v432 = vpop.f32.mrb[0].mxu0
        %v433 = vpop.f32.mrb[0].mxu0
        %v434 = vadd.f32 %v226, %v433
        %v435 = vpop.f32.mrb[0].mxu0
        %436 = vmatprep.mubr.bf16.mxu0 0
        %437 = vmatmul.mubr.bf16.gmra.mrb[0].mxu0 %v296
        %v438 = vpop.f32.mrb[0].mxu0
        %v439 = vadd.f32 %v226, %v438
        %v440 = vpop.f32.mrb[0].mxu0
        %v441 = vpop.f32.mrb[0].mxu0
        %v442 = vadd.f32 %v226, %v441
        %v443 = vpop.f32.mrb[0].mxu0
        %444 = vmatprep.mubr.bf16.mxu0 0
        %445 = vmatmul.mubr.bf16.gmra.mrb[0].mxu0 %v297
        %v446 = vpop.f32.mrb[0].mxu0
        %v447 = vadd.f32 %v226, %v446
        %v448 = vpop.f32.mrb[0].mxu0
        %v449 = vpop.f32.mrb[0].mxu0
        %v450 = vadd.f32 %v226, %v449
        %v451 = vpop.f32.mrb[0].mxu0
        %452 = vmatprep.mubr.bf16.mxu0 0
        %453 = vmatmul.mubr.bf16.gmra.mrb[0].mxu0 %v298
        %v454 = vpop.f32.mrb[0].mxu0
        %v455 = vadd.f32 %v226, %v454
        %v456 = vpop.f32.mrb[0].mxu0
        %v457 = vpop.f32.mrb[0].mxu0
        %v458 = vadd.f32 %v226, %v457
        %v459 = vpop.f32.mrb[0].mxu0
        %460 = vmatprep.mubr.bf16.mxu0 0
        %461 = vmatmul.mubr.bf16.gmra.mrb[0].mxu0 %v299
        %v462 = vpop.f32.mrb[0].mxu0
        %v463 = vadd.f32 %v226, %v462
        %v464 = vpop.f32.mrb[0].mxu0
        %v465 = vpop.f32.mrb[0].mxu0
        %v466 = vadd.f32 %v226, %v465
        %v467 = vpop.f32.mrb[0].mxu0
        %468 = vmatprep.mubr.bf16.mxu0 0
        %469 = vmatmul.mubr.bf16.gmra.mrb[0].mxu0 %v300
        %v470 = vpop.f32.mrb[0].mxu0
        %v471 = vadd.f32 %v226, %v470
        %v472 = vpop.f32.mrb[0].mxu0
        %v473 = vpop.f32.mrb[0].mxu0
        %v474 = vadd.f32 %v226, %v473
        %v475 = vpop.f32.mrb[0].mxu0
        %476 = vmatprep.mubr.bf16.mxu0 0
        %477 = vmatmul.mubr.bf16.gmra.mrb[0].mxu0 %v301
        %v478 = vpop.f32.mrb[0].mxu0
        %v479 = vadd.f32 %v226, %v478
        %v480 = vpop.f32.mrb[0].mxu0
        %v481 = vpop.f32.mrb[0].mxu0
        %v482 = vadd.f32 %v226, %v481
        %v483 = vpop.f32.mrb[0].mxu0
        %484 = vmatprep.mubr.bf16.mxu0 0
        %485 = vmatmul.mubr.bf16.gmra.mrb[0].mxu0 %v302
        %v486 = vpop.f32.mrb[0].mxu0
        %v487 = vadd.f32 %v226, %v486
        %v488 = vpop.f32.mrb[0].mxu0
        %v489 = vpop.f32.mrb[0].mxu0
        %v490 = vadd.f32 %v226, %v489
        %v491 = vpop.f32.mrb[0].mxu0
        %492 = vmatprep.mubr.bf16.mxu0 0
        %493 = vmatmul.mubr.bf16.gmra.mrb[0].mxu0 %v303
        %v494 = vpop.f32.mrb[0].mxu0
        %v495 = vadd.f32 %v226, %v494
        %v496 = vpop.f32.mrb[0].mxu0
        %v497 = vpop.f32.mrb[0].mxu0
        %v498 = vadd.f32 %v226, %v497
        %v499 = vpop.f32.mrb[0].mxu0
        %500 = vmatprep.mubr.bf16.mxu0 0
        %501 = vmatmul.mubr.bf16.gmra.mrb[0].mxu0 %v304
        %v502 = vpop.f32.mrb[0].mxu0
        %v503 = vadd.f32 %v226, %v502
        %v504 = vpop.f32.mrb[0].mxu0
        %v505 = vpop.f32.mrb[0].mxu0
        %v506 = vadd.f32 %v226, %v505
        %v507 = vpop.f32.mrb[0].mxu0
        %508 = vmatprep.mubr.bf16.mxu0 0
        %509 = vmatmul.mubr.bf16.gmra.mrb[0].mxu0 %v305
        %v510 = vpop.f32.mrb[0].mxu0
        %v511 = vadd.f32 %v226, %v510
        %v512 = vpop.f32.mrb[0].mxu0
        %v513 = vpop.f32.mrb[0].mxu0
        %v514 = vadd.f32 %v226, %v513
        %v515 = vpop.f32.mrb[0].mxu0
        %516 = vmatprep.mubr.bf16.mxu0 0
        %517 = vmatmul.mubr.bf16.gmra.mrb[0].mxu0 %v306
        %v518 = vpop.f32.mrb[0].mxu0
        %v519 = vadd.f32 %v226, %v518
        %v520 = vpop.f32.mrb[0].mxu0
        %v521 = vpop.f32.mrb[0].mxu0
        %v522 = vadd.f32 %v226, %v521
        %v523 = vpop.f32.mrb[0].mxu0
        %524 = vmatprep.mubr.bf16.mxu0 0
        %525 = vmatmul.mubr.bf16.gmra.mrb[0].mxu0 %v307
        %v526 = vpop.f32.mrb[0].mxu0
        %v527 = vadd.f32 %v226, %v526
        %v528 = vpop.f32.mrb[0].mxu0
        %v529 = vpop.f32.mrb[0].mxu0
        %v530 = vadd.f32 %v226, %v529
        %v531 = vpop.f32.mrb[0].mxu0
        %532 = vdwg.mxu0
        %v533 = vmax.f32 %v407, 0.0
        %v534 = vmax.f32 %v410, 0.0
        %v535 = vmax.f32 %v415, 0.0
        %v536 = vmax.f32 %v418, 0.0
        %v537 = vmax.f32 %v423, 0.0
        %v538 = vmax.f32 %v426, 0.0
        %v539 = vmax.f32 %v431, 0.0
        %v540 = vmax.f32 %v434, 0.0
        %v541 = vmax.f32 %v439, 0.0
        %v542 = vmax.f32 %v442, 0.0
        %v543 = vmax.f32 %v447, 0.0
        %v544 = vmax.f32 %v450, 0.0
        %v545 = vmax.f32 %v455, 0.0
        %v546 = vmax.f32 %v458, 0.0
        %v547 = vmax.f32 %v463, 0.0
        %v548 = vmax.f32 %v466, 0.0
        %v549 = vmax.f32 %v471, 0.0
        %v550 = vmax.f32 %v474, 0.0
        %v551 = vmax.f32 %v479, 0.0
        %v552 = vmax.f32 %v482, 0.0
        %v553 = vmax.f32 %v487, 0.0
        %v554 = vmax.f32 %v490, 0.0
        %v555 = vmax.f32 %v495, 0.0
        %v556 = vmax.f32 %v498, 0.0
        %v557 = vmax.f32 %v503, 0.0
        %v558 = vmax.f32 %v506, 0.0
        %v559 = vmax.f32 %v511, 0.0
        %v560 = vmax.f32 %v514, 0.0
        %v561 = vmax.f32 %v519, 0.0
        %v562 = vmax.f32 %v522, 0.0
        %v563 = vmax.f32 %v527, 0.0
        %v564 = vmax.f32 %v530, 0.0
        %565 = vst [vmem:[%s164] sm:$0xff] %v533
        %566 = vst [vmem:[%s164 + $0x8] sm:$0xff] %v534
        %567 = vst [vmem:[%s164 + $0x10] sm:$0xff] %v535
        %568 = vst [vmem:[%s164 + $0x18] sm:$0xff] %v536
        %569 = vst [vmem:[%s164 + $0x20] sm:$0xff] %v537
        %570 = vst [vmem:[%s164 + $0x28] sm:$0xff] %v538
        %571 = vst [vmem:[%s164 + $0x30] sm:$0xff] %v539
        %572 = vst [vmem:[%s164 + $0x38] sm:$0xff] %v540
        %573 = vst [vmem:[%s164 + $0x40] sm:$0xff] %v541
        %574 = vst [vmem:[%s164 + $0x48] sm:$0xff] %v542
        %575 = vst [vmem:[%s164 + $0x50] sm:$0xff] %v543
        %576 = vst [vmem:[%s164 + $0x58] sm:$0xff] %v544
        %577 = vst [vmem:[%s164 + $0x60] sm:$0xff] %v545
        %578 = vst [vmem:[%s164 + $0x68] sm:$0xff] %v546
        %579 = vst [vmem:[%s164 + $0x70] sm:$0xff] %v547
        %580 = vst [vmem:[%s164 + $0x78] sm:$0xff] %v548
        %581 = vst [vmem:[%s164 + $0x80] sm:$0xff] %v549
        %582 = vst [vmem:[%s164 + $0x88] sm:$0xff] %v550
        %583 = vst [vmem:[%s164 + $0x90] sm:$0xff] %v551
        %584 = vst [vmem:[%s164 + $0x98] sm:$0xff] %v552
        %585 = vst [vmem:[%s164 + $0xa0] sm:$0xff] %v553
        %586 = vst [vmem:[%s164 + $0xa8] sm:$0xff] %v554
        %587 = vst [vmem:[%s164 + $0xb0] sm:$0xff] %v555
        %588 = vst [vmem:[%s164 + $0xb8] sm:$0xff] %v556
        %589 = vst [vmem:[%s164 + $0xc0] sm:$0xff] %v557
        %590 = vst [vmem:[%s164 + $0xc8] sm:$0xff] %v558
        %591 = vst [vmem:[%s164 + $0xd0] sm:$0xff] %v559
        %592 = vst [vmem:[%s164 + $0xd8] sm:$0xff] %v560
        %593 = vst [vmem:[%s164 + $0xe0] sm:$0xff] %v561
        %594 = vst [vmem:[%s164 + $0xe8] sm:$0xff] %v562
        %595 = vst [vmem:[%s164 + $0xf0] sm:$0xff] %v563
        %596 = vst [vmem:[%s164 + $0xf8] sm:$0xff] %v564
        %s597 = sand.u32 %s93, 1
        %s598 = scalar_lea.sflag [#allocation3], %s597
        %s599 = sand.u32 %s93, 1
        %s600 = smul.addr %s599, 256
        %s601 = scalar_lea.vmem [#allocation2], %s600
        // Predicated region
        $region33: #{basic_conv2d_pallas.1} parent=31 // pred_check
          %p602 = pneg %p103
        $region34: #{basic_conv2d_pallas.1} parent=31 // pred_check_branch
          %604 = sbr.rel (%p602) target = $region36
        $region35: #{basic_conv2d_pallas.1} parent=31 // pred_region
          %s605 = smul.u32 32, %s17
          %s607 = ssub.s32 4096, 4096
          %608 = vsyncadd %s598, %s607
          %s609 = smul.addr %s605, 128
          %s610 = scalar_lea.hbm %s3, %s609
          %s611 = sshll.u32 %s601, 4
          %s612 = int_to_ptr.vmem [resolvable:$true] %s611
          %617 = dma.vmem_to_hbm [thread:$0]  %s612, 4096, %s610, %s598, 128, 128, 8
        $region36: #{basic_conv2d_pallas.1} parent=31 // pred_fallthru
          _
      $region32: #{basic_conv2d_pallas.1} parent=5 // pred_fallthru
        _
      %p618 = scmp.le.s32.totalorder 2, %s12
      // Predicated region
      $region37: #{basic_conv2d_pallas.1} parent=5 // pred_check
        %p619 = pneg %p618
      $region38: #{basic_conv2d_pallas.1} parent=5 // pred_check_branch
        %621 = sbr.rel (%p619) target = $region40
      $region39: #{basic_conv2d_pallas.1} parent=5 // pred_region
        %s622 = ssub.s32 %s12, 2
        // Predicated region
        $region41: #{basic_conv2d_pallas.1} parent=39 // pred_check
          %p623 = pneg %p109
        $region42: #{basic_conv2d_pallas.1} parent=39 // pred_check_branch
          %625 = sbr.rel (%p623) target = $region44
        $region43: #{basic_conv2d_pallas.1} parent=39 // pred_region
          %s626 = sand.u32 %s94, 1
          %s627 = scalar_lea.sflag [#allocation3], %s626
          %s628 = sand.u32 %s94, 1
          %s629 = smul.addr %s628, 256
          %s630 = scalar_lea.vmem [#allocation2], %s629
          %631 = dma.done %s627, 4096
        $region44: #{basic_conv2d_pallas.1} parent=39 // pred_fallthru
          _
      $region40: #{basic_conv2d_pallas.1} parent=5 // pred_fallthru
        _
    $region6: #{basic_conv2d_pallas.1} parent=1 // loop_footer
      %s16 = sadd.s32 1, %s12
    $region7: #{basic_conv2d_pallas.1} parent=1 // loop_footer_branch
      %11 = sbr.rel target = $region3
    $region8: #{basic_conv2d_pallas.1} parent=1 // loop_exit
      _
    %632 = vsyncpa [#allocation3], 1
    %s633 = scalar_lea.sflag [#allocation3], 1
    %634 = vsyncpa %s633, 1

</llo_original>
